<compile_context>
chip_gen: v5e
topology: v5e:2x2
jax: 0.10.0
libtpu: 0.0.40
codegen_flags: <defaults>
</compile_context>

<pallas_src>
import functools

import jax
import jax.numpy as jnp
from jax.experimental import pallas as pl
from jax.experimental.pallas import tpu as pltpu

_LANE = 128                      # vreg lane width
_TARGET_BLOCK_BYTES = 2 << 20    # per-buffer x block target (~roofline knee)
_BLOCK_CAP_BYTES = 4 << 20       # hard cap for a single x block


def _se_kernel(x_ref, w1t_ref, b1_ref, w2t_ref, b2_ref, o_ref, acc_ref,
               *, hw_true, hwt, needs_mask, c_chunk):
    # x_ref:   (NT, C, hwt)    current HW tile of the flattened input (may be partial)
    # w1t_ref: (C, C//16)      fc1 weight, pre-transposed (in_features, out_features)
    # b1_ref:  (1, C//16)
    # w2t_ref: (C//16, C)      fc2 weight, pre-transposed
    # b2_ref:  (1, C)
    # o_ref:   (NT, 1, C)      sigmoid gate for this batch block
    # acc_ref: (NT, C, 128)    persistent f32 lane-wide pooled-sum accumulator
    hw_idx = pl.program_id(1)

    # Zero the accumulator at the first HW tile of each batch block.
    @pl.when(hw_idx == 0)
    def _():
        acc_ref[...] = jnp.zeros_like(acc_ref)

    C = x_ref.shape[1]
    n_slices = hwt // _LANE

    if needs_mask:
        base = hw_idx * hwt
        lane_ids = jax.lax.broadcasted_iota(jnp.int32, (1, 1, _LANE), 2)

    # Fold this HW tile down to 128 lanes with VPU adds only, chunked over C so
    # the live `partial` vreg footprint stays small (no spill stores).
    for c0 in range(0, C, c_chunk):
        cc = min(c_chunk, C - c0)
        partial = None
        for k in range(n_slices):                       # static, lane-aligned slices
            xs = x_ref[:, c0:c0 + cc, k * _LANE:(k + 1) * _LANE].astype(jnp.float32)
            if needs_mask:
                valid = hw_true - base - k * _LANE      # remaining true elements
                xs = jnp.where(lane_ids < valid, xs, 0.0)
            partial = xs if partial is None else partial + xs
        acc_ref[:, c0:c0 + cc, :] += partial

    # Epilogue: tiny FC stack, run once per batch block on the last HW step.
    @pl.when(hw_idx == pl.num_programs(1) - 1)
    def _():
        # Single cross-lane reduce, then mean with the true H*W divisor.
        pooled = jnp.sum(acc_ref[...], axis=-1) * (1.0 / hw_true)      # (NT, C) f32

        h = jnp.dot(pooled.astype(w1t_ref.dtype), w1t_ref[...],
                    preferred_element_type=jnp.float32)
        h = jnp.maximum(h + b1_ref[...].astype(jnp.float32), 0.0)      # (NT, C//16)

        s = jnp.dot(h.astype(w2t_ref.dtype), w2t_ref[...],
                    preferred_element_type=jnp.float32)
        s = s + b2_ref[...].astype(jnp.float32)                        # (NT, C)
        o_ref[...] = jax.nn.sigmoid(s).reshape(o_ref.shape).astype(o_ref.dtype)


def _pick_n_tile(N, block_bytes_one, cap_bytes):
    """Largest divisor of N keeping the x block under cap; keep grid[0] >= 2 if N >= 2."""
    best = 1
    for d in range(1, N + 1):
        if N % d == 0 and d * block_bytes_one <= cap_bytes:
            best = d
    if N >= 2 and N // best < 2:
        # v7x megacore: the N axis is the only "parallel" axis, so keep >= 2 steps.
        for d in range(N // 2, 0, -1):
            if N % d == 0:
                best = d
                break
    return best


def se_block_forward(x_nchw, w1, b1, w2, b2, *, hw_tile=None, n_tile=None):
    """SEBlock forward.

    x_nchw: (N, C, H, W)
    w1: (C//16, C)  fc1 weight (PyTorch layout: out_features x in_features)
    b1: (C//16,)
    w2: (C, C//16)  fc2 weight
    b2: (C,)
    returns: (N, C, 1, 1) sigmoid attention weights, like the PyTorch module.
    """
    N, C, H, W = x_nchw.shape
    hidden = w1.shape[0]
    hw = H * W
    itemsize = jnp.dtype(x_nchw.dtype).itemsize
    w_itemsize = jnp.dtype(w1.dtype).itemsize

    # ---- plain-JAX glue (no padding of x: the tail is masked in-kernel) ----
    x_flat = x_nchw.reshape(N, C, hw)

    # HW tile: multiple of 128 lanes, sized so one (1, C, hwt) block is ~<= 2 MiB.
    hw_ceil = pl.cdiv(hw, _LANE) * _LANE
    max_hwt = max(_LANE, (_TARGET_BLOCK_BYTES // max(1, C * itemsize)) // _LANE * _LANE)
    hwt = hw_ceil if hw_tile is None else max(_LANE, min(int(hw_tile), hw_ceil))
    hwt = max(_LANE, (min(hwt, max_hwt) // _LANE) * _LANE)
    n_hw = pl.cdiv(hw, hwt)
    needs_mask = (hw % hwt) != 0

    # Batch tile: keep n_tile * C * hwt * itemsize under the cap; prefer grid[0] >= 2.
    block_one = C * hwt * itemsize
    if n_tile is None or N % n_tile != 0:
        n_tile = _pick_n_tile(N, block_one, _BLOCK_CAP_BYTES)

    # Channel chunk for the in-kernel fold: bounds the live f32 `partial` vregs.
    c_chunk = min(C, max(8, 128 // n_tile))

    # Pre-transpose weights so the kernel does row-major matmuls on the MXU.
    w1t = w1.T                      # (C, hidden)
    w2t = w2.T                      # (hidden, C)
    b1_2d = b1.reshape(1, hidden)
    b2_2d = b2.reshape(1, C)

    # ---- VMEM budget derived from the actual blocks (safe on v7x's 64 MiB) ----
    x_block_bytes = n_tile * block_one
    acc_bytes = n_tile * C * _LANE * 4
    wt_bytes = (2 * C * hidden + hidden + C) * w_itemsize
    out_block_bytes = n_tile * C * itemsize
    need = 2 * x_block_bytes + acc_bytes + 2 * wt_bytes + 2 * out_block_bytes
    vmem_limit = int(min(40 << 20, max(2 * need, 8 << 20)))

    cost = pl.CostEstimate(
        flops=N * C * hw + 4 * N * C * hidden,
        transcendentals=N * C,
        bytes_accessed=N * C * hw * itemsize + wt_bytes + N * C * itemsize,
    )

    grid = (N // n_tile, n_hw)

    out = pl.pallas_call(
        functools.partial(_se_kernel, hw_true=hw, hwt=hwt,
                          needs_mask=needs_mask, c_chunk=c_chunk),
        out_shape=jax.ShapeDtypeStruct((N, 1, C), x_nchw.dtype),
        grid_spec=pltpu.PrefetchScalarGridSpec(
            num_scalar_prefetch=0,
            grid=grid,
            in_specs=[
                pl.BlockSpec((n_tile, C, hwt), lambda n, h: (n, 0, h)),
                pl.BlockSpec((C, hidden), lambda n, h: (0, 0)),   # resident
                pl.BlockSpec((1, hidden), lambda n, h: (0, 0)),   # resident
                pl.BlockSpec((hidden, C), lambda n, h: (0, 0)),   # resident
                pl.BlockSpec((1, C), lambda n, h: (0, 0)),        # resident
            ],
            out_specs=pl.BlockSpec((n_tile, 1, C), lambda n, h: (n, 0, 0)),
            scratch_shapes=[pltpu.VMEM((n_tile, C, _LANE), jnp.float32)],
        ),
        compiler_params=pltpu.CompilerParams(
            # N axis shards across TensorCores on v7x; HW is the reduction axis
            # (innermost + "arbitrary" -- required for the accumulator pattern).
            dimension_semantics=("parallel", "arbitrary"),
            vmem_limit_bytes=vmem_limit,
        ),
        cost_estimate=cost,
    )(x_flat, w1t, b1_2d, w2t, b2_2d)

    # TODO(synk): when N == 1 the second TensorCore on v7x idles; splitting the
    # HW reduction across cores would need per-core partial accumulators + combine.
    return out.reshape(N, C, 1, 1)


def _reference(x_nchw, w1, b1, w2, b2):
    # Pure-JAX reference of the PyTorch forward, for correctness checks.
    pooled = jnp.mean(x_nchw, axis=(2, 3))                  # (N, C)
    h = jnp.maximum(pooled @ w1.T + b1, 0.0)                # (N, C//16)
    s = jax.nn.sigmoid(h @ w2.T + b2)                       # (N, C)
    return s[:, :, None, None]


def _make_params(key, C, dtype=jnp.float32):
    hidden = C // 16
    kw1, kw2 = jax.random.split(key)
    # kaiming-normal-ish init (std = sqrt(2 / fan_in)), zero biases (SEBlock.init()).
    w1 = jax.random.normal(kw1, (hidden, C), dtype=dtype) * jnp.sqrt(2.0 / C)
    b1 = jnp.zeros((hidden,), dtype=dtype)
    w2 = jax.random.normal(kw2, (C, hidden), dtype=dtype) * jnp.sqrt(2.0 / hidden)
    b2 = jnp.zeros((C,), dtype=dtype)
    return w1, b1, w2, b2


if __name__ == "__main__":
    key = jax.random.PRNGKey(0)
    k1, k2, k3, k4, k5, k6 = jax.random.split(key, 6)

    # Test 1: HW divides the tile evenly, multi-step HW reduction (grid = (2, 2)).
    N, C, H, W = 2, 64, 16, 16
    x = jax.random.normal(k1, (N, C, H, W), dtype=jnp.float32)
    w1, b1, w2, b2 = _make_params(k2, C)
    out = jax.block_until_ready(se_block_forward(x, w1, b1, w2, b2, hw_tile=128))
    ref = _reference(x, w1, b1, w2, b2)
    assert out.shape == (N, C, 1, 1), out.shape
    assert jnp.allclose(out, ref, atol=1e-5, rtol=1e-5), \
        float(jnp.max(jnp.abs(out - ref)))

    # Test 2: ragged HW (10*10 = 100 < 128): one partial block, in-kernel tail mask,
    # auto-derived tiling.
    N2, C2, H2, W2 = 3, 32, 10, 10
    x2 = jax.random.normal(k3, (N2, C2, H2, W2), dtype=jnp.float32)
    w1b, b1b, w2b, b2b = _make_params(k4, C2)
    out2 = jax.block_until_ready(se_block_forward(x2, w1b, b1b, w2b, b2b))
    ref2 = _reference(x2, w1b, b1b, w2b, b2b)
    assert out2.shape == (N2, C2, 1, 1), out2.shape
    assert jnp.allclose(out2, ref2, atol=1e-5, rtol=1e-5), \
        float(jnp.max(jnp.abs(out2 - ref2)))

    # Test 3: ragged HW across multiple tiles (14*14 = 196, hwt = 128) plus
    # channel-chunked fold (C=256 > c_chunk=128).
    N3, C3, H3, W3 = 2, 256, 14, 14
    x3 = jax.random.normal(k5, (N3, C3, H3, W3), dtype=jnp.float32)
    w1c, b1c, w2c, b2c = _make_params(k6, C3)
    out3 = jax.block_until_ready(se_block_forward(x3, w1c, b1c, w2c, b2c, hw_tile=128))
    ref3 = _reference(x3, w1c, b1c, w2c, b2c)
    assert out3.shape == (N3, C3, 1, 1), out3.shape
    assert jnp.allclose(out3, ref3, atol=1e-5, rtol=1e-5), \
        float(jnp.max(jnp.abs(out3 - ref3)))

    print("KERNEL_OK")
</pallas_src>

<mosaic_0001>
module attributes {stable_mosaic.version = 11 : i64} {
  func.func @_se_kernel(%arg0: i32, %arg1: i32, %arg2: memref<1x64x128xf32, #tpu.memory_space<vmem>>, %arg3: memref<64x4xf32, #tpu.memory_space<vmem>>, %arg4: memref<1x4xf32, #tpu.memory_space<vmem>>, %arg5: memref<4x64xf32, #tpu.memory_space<vmem>>, %arg6: memref<1x64xf32, #tpu.memory_space<vmem>>, %arg7: memref<1x1x64xf32, #tpu.memory_space<vmem>>, %arg8: memref<1x64x128xf32, #tpu.memory_space<vmem>>) attributes {dimension_semantics = [#tpu.dimension_semantics<parallel>, #tpu.dimension_semantics<arbitrary>], iteration_bounds = array<i64: 2, 2>, scalar_prefetch = 0 : i64, scratch_operands = 1 : i64, tpu.core_type = #tpu.core_type<tc>, window_params = [{transform_indices = @transform_0, window_bounds = array<i64: 1, 64, 128>}, {pipeline_mode = #tpu.pipeline_mode<synchronous>, transform_indices = @transform_1, window_bounds = array<i64: 64, 4>}, {pipeline_mode = #tpu.pipeline_mode<synchronous>, transform_indices = @transform_2, window_bounds = array<i64: 1, 4>}, {pipeline_mode = #tpu.pipeline_mode<synchronous>, transform_indices = @transform_3, window_bounds = array<i64: 4, 64>}, {pipeline_mode = #tpu.pipeline_mode<synchronous>, transform_indices = @transform_4, window_bounds = array<i64: 1, 64>}, {transform_indices = @transform_5, window_bounds = array<i64: 1, 1, 64>}]} {
    %c0_i32 = arith.constant 0 : i32
    %0 = arith.cmpi eq, %arg1, %c0_i32 : i32
    %1 = arith.extui %0 : i1 to i32
    %c0_i32_0 = arith.constant 0 : i32
    %2 = arith.cmpi ne, %1, %c0_i32_0 : i32
    scf.if %2 {
      %cst = arith.constant 0.000000e+00 : f32
      %10 = vector.broadcast %cst : f32 to vector<1x64x128xf32>
      %c0_10 = arith.constant 0 : index
      %c0_11 = arith.constant 0 : index
      %c0_12 = arith.constant 0 : index
      %11 = vector.load %arg8[%c0_10, %c0_11, %c0_12] : memref<1x64x128xf32, #tpu.memory_space<vmem>>, vector<1x64x128xf32>
      tpu.vector_store %arg8[%c0_10, %c0_11, %c0_12], %10 {strides = array<i32>} : memref<1x64x128xf32, #tpu.memory_space<vmem>>, vector<1x64x128xf32>,
    } else {
    }
    %c0 = arith.constant 0 : index
    %c0_1 = arith.constant 0 : index
    %c0_2 = arith.constant 0 : index
    %3 = vector.load %arg2[%c0, %c0_1, %c0_2] : memref<1x64x128xf32, #tpu.memory_space<vmem>>, vector<1x64x128xf32>
    %c0_3 = arith.constant 0 : index
    %c0_4 = arith.constant 0 : index
    %c0_5 = arith.constant 0 : index
    %4 = vector.load %arg8[%c0_3, %c0_4, %c0_5] : memref<1x64x128xf32, #tpu.memory_space<vmem>>, vector<1x64x128xf32>
    %5 = arith.addf %4, %3 : vector<1x64x128xf32>
    %c0_6 = arith.constant 0 : index
    %c0_7 = arith.constant 0 : index
    %c0_8 = arith.constant 0 : index
    %6 = vector.load %arg8[%c0_6, %c0_7, %c0_8] : memref<1x64x128xf32, #tpu.memory_space<vmem>>, vector<1x64x128xf32>
    tpu.vector_store %arg8[%c0_6, %c0_7, %c0_8], %5 {strides = array<i32>} : memref<1x64x128xf32, #tpu.memory_space<vmem>>, vector<1x64x128xf32>,
    %c1_i32 = arith.constant 1 : i32
    %7 = arith.cmpi eq, %arg1, %c1_i32 : i32
    %8 = arith.extui %7 : i1 to i32
    %c0_i32_9 = arith.constant 0 : i32
    %9 = arith.cmpi ne, %8, %c0_i32_9 : i32
    scf.if %9 {
      %c0_10 = arith.constant 0 : index
      %c0_11 = arith.constant 0 : index
      %c0_12 = arith.constant 0 : index
      %10 = vector.load %arg8[%c0_10, %c0_11, %c0_12] : memref<1x64x128xf32, #tpu.memory_space<vmem>>, vector<1x64x128xf32>
      %cst = arith.constant dense<0.000000e+00> : vector<1x64xf32>
      %11 = vector.multi_reduction <add>, %10, %cst [2] : vector<1x64x128xf32> to vector<1x64xf32>
      %cst_13 = arith.constant 3.906250e-03 : f32
      %12 = vector.broadcast %cst_13 : f32 to vector<1x64xf32>
      %13 = arith.mulf %11, %12 : vector<1x64xf32>
      %c0_14 = arith.constant 0 : index
      %c0_15 = arith.constant 0 : index
      %14 = vector.load %arg3[%c0_14, %c0_15] : memref<64x4xf32, #tpu.memory_space<vmem>>, vector<64x4xf32>
      %cst_16 = arith.constant dense<0.000000e+00> : vector<1x4xf32>
      %15 = tpu.matmul %13, %14, %cst_16 {dimension_numbers = #tpu.dot_dimension_numbers<[1], [0], [0], [1], [0, 0, 1, 1], [], []>} : vector<1x64xf32>, vector<64x4xf32>, vector<1x4xf32> -> vector<1x4xf32>
      %c0_17 = arith.constant 0 : index
      %c0_18 = arith.constant 0 : index
      %16 = vector.load %arg4[%c0_17, %c0_18] : memref<1x4xf32, #tpu.memory_space<vmem>>, vector<1x4xf32>
      %17 = arith.addf %15, %16 : vector<1x4xf32>
      %cst_19 = arith.constant 0.000000e+00 : f32
      %18 = vector.broadcast %cst_19 : f32 to vector<1x4xf32>
      %19 = arith.maximumf %17, %18 : vector<1x4xf32>
      %c0_20 = arith.constant 0 : index
      %c0_21 = arith.constant 0 : index
      %20 = vector.load %arg5[%c0_20, %c0_21] : memref<4x64xf32, #tpu.memory_space<vmem>>, vector<4x64xf32>
      %cst_22 = arith.constant dense<0.000000e+00> : vector<1x64xf32>
      %21 = tpu.matmul %19, %20, %cst_22 {dimension_numbers = #tpu.dot_dimension_numbers<[1], [0], [0], [1], [0, 0, 1, 1], [], []>} : vector<1x4xf32>, vector<4x64xf32>, vector<1x64xf32> -> vector<1x64xf32>
      %c0_23 = arith.constant 0 : index
      %c0_24 = arith.constant 0 : index
      %22 = vector.load %arg6[%c0_23, %c0_24] : memref<1x64xf32, #tpu.memory_space<vmem>>, vector<1x64xf32>
      %23 = arith.addf %21, %22 : vector<1x64xf32>
      %24 = arith.negf %23 : vector<1x64xf32>
      %25 = math.exp %24 : vector<1x64xf32>
      %cst_25 = arith.constant 1.000000e+00 : f32
      %26 = vector.broadcast %cst_25 : f32 to vector<1x64xf32>
      %27 = arith.addf %26, %25 : vector<1x64xf32>
      %28 = arith.divf %26, %27 : vector<1x64xf32>
      %29 = vector.shape_cast %28 : vector<1x64xf32> to vector<1x1x64xf32>
      %c0_26 = arith.constant 0 : index
      %c0_27 = arith.constant 0 : index
      %c0_28 = arith.constant 0 : index
      %30 = vector.load %arg7[%c0_26, %c0_27, %c0_28] : memref<1x1x64xf32, #tpu.memory_space<vmem>>, vector<1x1x64xf32>
      tpu.vector_store %arg7[%c0_26, %c0_27, %c0_28], %29 {strides = array<i32>} : memref<1x1x64xf32, #tpu.memory_space<vmem>>, vector<1x1x64xf32>,
    } else {
    }
    return
  }
  func.func @transform_0(%arg0: i32, %arg1: i32) -> (i32, i32, i32) {
    %c0_i32 = arith.constant 0 : i32
    %c0_i32_0 = arith.constant 0 : i32
    return %arg0, %c0_i32, %arg1 : i32, i32, i32
  }
  func.func @transform_1(%arg0: i32, %arg1: i32) -> (i32, i32) {
    %c0_i32 = arith.constant 0 : i32
    %c0_i32_0 = arith.constant 0 : i32
    %c0_i32_1 = arith.constant 0 : i32
    return %c0_i32, %c0_i32_0 : i32, i32
  }
  func.func @transform_2(%arg0: i32, %arg1: i32) -> (i32, i32) {
    %c0_i32 = arith.constant 0 : i32
    %c0_i32_0 = arith.constant 0 : i32
    %c0_i32_1 = arith.constant 0 : i32
    return %c0_i32, %c0_i32_0 : i32, i32
  }
  func.func @transform_3(%arg0: i32, %arg1: i32) -> (i32, i32) {
    %c0_i32 = arith.constant 0 : i32
    %c0_i32_0 = arith.constant 0 : i32
    %c0_i32_1 = arith.constant 0 : i32
    return %c0_i32, %c0_i32_0 : i32, i32
  }
  func.func @transform_4(%arg0: i32, %arg1: i32) -> (i32, i32) {
    %c0_i32 = arith.constant 0 : i32
    %c0_i32_0 = arith.constant 0 : i32
    %c0_i32_1 = arith.constant 0 : i32
    return %c0_i32, %c0_i32_0 : i32, i32
  }
  func.func @transform_5(%arg0: i32, %arg1: i32) -> (i32, i32, i32) {
    %c0_i32 = arith.constant 0 : i32
    %c0_i32_0 = arith.constant 0 : i32
    %c0_i32_1 = arith.constant 0 : i32
    return %arg0, %c0_i32, %c0_i32_0 : i32, i32, i32
  }
}

</mosaic_0001>

<llo_original>
// kernel: tpu_custom_call.1
$region0: #{tpu_custom_call.1}
  #allocation0 [shape = 'u32[]', space=smem, size = 0x4, offset = 0x4, fixed_abs, tag = 'smem constant byte address 0x4 - core index']
  #allocation1 [shape = 'u32[72,128]{1,0:T(1,128)}', space=vmem, size = 0x9000, scoped, tag = 'internal scratch']
  #allocation2 [shape = 'f32[1,64,128]{2,1,0:T(8,128)}', space=vmem, size = 0x8000, scoped, tag = 'scratch operand']
  %s0 = inlined_call_operand.hbm [shape: f32[2,64,256], index: 0, kind: input, shape index: {}]
  %s1 = inlined_call_operand.vmem [shape: f32[64,4], index: 1, kind: input, shape index: {}]
  %s2 = inlined_call_operand.vmem [shape: f32[1,4], index: 2, kind: input, shape index: {}]
  %s3 = inlined_call_operand.vmem [shape: f32[4,64], index: 3, kind: input, shape index: {}]
  %s4 = inlined_call_operand.vmem [shape: f32[1,64], index: 4, kind: input, shape index: {}]
  %s5 = inlined_call_operand.hbm [shape: f32[2,1,64], index: 5, kind: output, shape index: {}]
  %s6 = sld [smem:[#allocation0]]
  $region65: #{tpu_custom_call.1} parent=0
    _
  %s8 = ssub.s32 1, %s6
  %s9 = scalar_select 0, %s8, %s6
  $region1: #{tpu_custom_call.1} parent=0
    #allocation3 [shape = 'u8[65536]{0}', space=vmem, size = 0x10000, scoped, tag = 'input window, operand 0']
    #allocation4 [shape = 's32[2]{0}', space=sflag, size = 0x8, scoped, tag = 'scoped memory for tpu_custom_call.1']
    #allocation5 [shape = 's32[2]{0}', space=sflag, size = 0x8, scoped, tag = 'scoped memory for tpu_custom_call.1']
    #allocation6 [shape = 'u8[1024]{0}', space=vmem, size = 0x400, scoped, tag = 'output window, operand 0']
    %10 = vsyncpa [#allocation4], 0
    %s11 = scalar_lea.sflag [#allocation4], 1
    %12 = vsyncpa %s11, 0
    %13 = vsyncpa [#allocation5], 0
    %s14 = scalar_lea.sflag [#allocation5], 1
    %15 = vsyncpa %s14, 0
    loop: start=0, step=1, limit=6
    $region2: #{tpu_custom_call.1} parent=1 // loop_pre_header
      _
    $region3: #{tpu_custom_call.1} parent=1 // loop_header
      %s17 = sphi 0, %s21
      %p18 = scmp.ge.s32.totalorder %s17, 6
      %s24 = sphi 0, %s36
      %s25 = sphi 0, %s32
      %s26 = sphi 0, %s24
      %s27 = sphi 0, %s25
      %s28 = sphi 0, %s26
      %s29 = sphi 0, %s27
      %s41 = sphi 0, %s43
      %s44 = sphi 0, %s41
      %s45 = sphi 0, %s44
      %s61 = sphi 0, %s45
      %s65 = sphi 0, %s65
      %s67 = sphi 0, %s65
      %s68 = sphi 0, %s67
      %s82 = sphi 0, %s68
      %s86 = sphi 0, %s86
      %s88 = sphi 0, %s86
      %s89 = sphi 0, %s88
      %s103 = sphi 0, %s89
      %s107 = sphi 0, %s107
      %s109 = sphi 0, %s107
      %s110 = sphi 0, %s109
      %s124 = sphi 0, %s110
      %s128 = sphi 0, %s128
      %s130 = sphi 0, %s128
      %s131 = sphi 0, %s130
      %s145 = sphi 0, %s131
      %s151 = sphi 0, %s153
      %s154 = sphi 0, %s151
      %s155 = sphi 0, %s154
      %s171 = sphi 0, %s155
    $region4: #{tpu_custom_call.1} parent=1 // loop_header_branch
      %20 = sbr.rel (%p18) target = $region8
    $region5: #{tpu_custom_call.1} parent=1 // loop_body
      %s22 = ssub.s32 %s17, 1
      %s23 = ssub.s32 %s17, 2
      %s30 = sadd.s32 1, %s25
      %p31 = scmp.ge.s32.totalorder %s30, 2
      %s32 = scalar_select %p31, 0, %s30
      %s33 = sadd.s32 1, %s24
      %s34 = scalar_select %p31, %s33, %s24
      %p35 = scmp.ge.s32.totalorder %s34, 2
      %s36 = scalar_select %p35, 0, %s34
      %s37 = ssub.s32 %s24, %s36
      %s38 = ssub.s32 %s25, %s32
      %s39 = sor.u32 %s37, %s38
      %p40 = scmp.eq.s32.totalorder %s39, 0
      %s42 = sadd.s32 %s41, 1
      %s43 = scalar_select %p40, %s41, %s42
      %p46 = pneg %p40
      %p47 = scmp.eq.s32.totalorder %s17, 3
      %p48 = por %p46, %p47
      %p49 = scmp.ne.s32.totalorder %s41, %s44
      %p50 = scmp.eq.s32.totalorder %s17, 0
      %p51 = por %p49, %p50
      %p52 = scmp.ne.s32.totalorder %s41, %s44
      %p53 = scmp.eq.s32.totalorder %s22, 3
      %p54 = por %p52, %p53
      %p55 = scmp.ne.s32.totalorder %s44, %s45
      %p56 = scmp.eq.s32.totalorder %s22, 0
      %p57 = por %p55, %p56
      %p58 = scmp.ne.s32.totalorder %s44, %s45
      %p59 = scmp.eq.s32.totalorder %s23, 3
      %p60 = por %p58, %p59
      %p62 = scmp.ne.s32.totalorder %s45, %s61
      %p63 = scmp.eq.s32.totalorder %s23, 0
      %p64 = por %p62, %p63
      %s66 = sadd.s32 %s65, 1
      %p69 = scmp.eq.s32.totalorder %s17, 3
      %p70 = scmp.ne.s32.totalorder %s65, %s67
      %p71 = scmp.eq.s32.totalorder %s17, 0
      %p72 = por %p70, %p71
      %p73 = scmp.ne.s32.totalorder %s65, %s67
      %p74 = scmp.eq.s32.totalorder %s22, 3
      %p75 = por %p73, %p74
      %p76 = scmp.ne.s32.totalorder %s67, %s68
      %p77 = scmp.eq.s32.totalorder %s22, 0
      %p78 = por %p76, %p77
      %p79 = scmp.ne.s32.totalorder %s67, %s68
      %p80 = scmp.eq.s32.totalorder %s23, 3
      %p81 = por %p79, %p80
      %p83 = scmp.ne.s32.totalorder %s68, %s82
      %p84 = scmp.eq.s32.totalorder %s23, 0
      %p85 = por %p83, %p84
      %s87 = sadd.s32 %s86, 1
      %p90 = scmp.eq.s32.totalorder %s17, 3
      %p91 = scmp.ne.s32.totalorder %s86, %s88
      %p92 = scmp.eq.s32.totalorder %s17, 0
      %p93 = por %p91, %p92
      %p94 = scmp.ne.s32.totalorder %s86, %s88
      %p95 = scmp.eq.s32.totalorder %s22, 3
      %p96 = por %p94, %p95
      %p97 = scmp.ne.s32.totalorder %s88, %s89
      %p98 = scmp.eq.s32.totalorder %s22, 0
      %p99 = por %p97, %p98
      %p100 = scmp.ne.s32.totalorder %s88, %s89
      %p101 = scmp.eq.s32.totalorder %s23, 3
      %p102 = por %p100, %p101
      %p104 = scmp.ne.s32.totalorder %s89, %s103
      %p105 = scmp.eq.s32.totalorder %s23, 0
      %p106 = por %p104, %p105
      %s108 = sadd.s32 %s107, 1
      %p111 = scmp.eq.s32.totalorder %s17, 3
      %p112 = scmp.ne.s32.totalorder %s107, %s109
      %p113 = scmp.eq.s32.totalorder %s17, 0
      %p114 = por %p112, %p113
      %p115 = scmp.ne.s32.totalorder %s107, %s109
      %p116 = scmp.eq.s32.totalorder %s22, 3
      %p117 = por %p115, %p116
      %p118 = scmp.ne.s32.totalorder %s109, %s110
      %p119 = scmp.eq.s32.totalorder %s22, 0
      %p120 = por %p118, %p119
      %p121 = scmp.ne.s32.totalorder %s109, %s110
      %p122 = scmp.eq.s32.totalorder %s23, 3
      %p123 = por %p121, %p122
      %p125 = scmp.ne.s32.totalorder %s110, %s124
      %p126 = scmp.eq.s32.totalorder %s23, 0
      %p127 = por %p125, %p126
      %s129 = sadd.s32 %s128, 1
      %p132 = scmp.eq.s32.totalorder %s17, 3
      %p133 = scmp.ne.s32.totalorder %s128, %s130
      %p134 = scmp.eq.s32.totalorder %s17, 0
      %p135 = por %p133, %p134
      %p136 = scmp.ne.s32.totalorder %s128, %s130
      %p137 = scmp.eq.s32.totalorder %s22, 3
      %p138 = por %p136, %p137
      %p139 = scmp.ne.s32.totalorder %s130, %s131
      %p140 = scmp.eq.s32.totalorder %s22, 0
      %p141 = por %p139, %p140
      %p142 = scmp.ne.s32.totalorder %s130, %s131
      %p143 = scmp.eq.s32.totalorder %s23, 3
      %p144 = por %p142, %p143
      %p146 = scmp.ne.s32.totalorder %s131, %s145
      %p147 = scmp.eq.s32.totalorder %s23, 0
      %p148 = por %p146, %p147
      %s149 = ssub.s32 %s24, %s36
      %p150 = scmp.eq.s32.totalorder %s149, 0
      %s152 = sadd.s32 %s151, 1
      %s153 = scalar_select %p150, %s151, %s152
      %p156 = pneg %p150
      %p157 = scmp.eq.s32.totalorder %s17, 3
      %p158 = por %p156, %p157
      %p159 = scmp.ne.s32.totalorder %s151, %s154
      %p160 = scmp.eq.s32.totalorder %s17, 0
      %p161 = por %p159, %p160
      %p162 = scmp.ne.s32.totalorder %s151, %s154
      %p163 = scmp.eq.s32.totalorder %s22, 3
      %p164 = por %p162, %p163
      %p165 = scmp.ne.s32.totalorder %s154, %s155
      %p166 = scmp.eq.s32.totalorder %s22, 0
      %p167 = por %p165, %p166
      %p168 = scmp.ne.s32.totalorder %s154, %s155
      %p169 = scmp.eq.s32.totalorder %s23, 3
      %p170 = por %p168, %p169
      %p172 = scmp.ne.s32.totalorder %s155, %s171
      %p173 = scmp.eq.s32.totalorder %s23, 0
      %p174 = por %p172, %p173
      %p175 = scmp.le.s32.totalorder 1, %s17
      %p176 = scmp.lt.s32.totalorder %s17, 5
      %p177 = pnand %p175, %p176
      %p178 = pneg %p177
      // Predicated region
      $region9: #{tpu_custom_call.1} parent=5 // pred_check
        _
      $region10: #{tpu_custom_call.1} parent=5 // pred_check_branch
        %180 = sbr.rel (%p177) target = $region12
      $region11: #{tpu_custom_call.1} parent=5 // pred_region
        %s181 = ssub.s32 %s17, 1
        // Predicated region
        $region13: #{tpu_custom_call.1} parent=11 // pred_check
          %p182 = pneg %p78
        $region14: #{tpu_custom_call.1} parent=11 // pred_check_branch
          %184 = sbr.rel (%p182) target = $region16
        $region15: #{tpu_custom_call.1} parent=11 // pred_region
          _
        $region16: #{tpu_custom_call.1} parent=11 // pred_fallthru
          _
        // Predicated region
        $region17: #{tpu_custom_call.1} parent=11 // pred_check
          %p185 = pneg %p99
        $region18: #{tpu_custom_call.1} parent=11 // pred_check_branch
          %187 = sbr.rel (%p185) target = $region20
        $region19: #{tpu_custom_call.1} parent=11 // pred_region
          _
        $region20: #{tpu_custom_call.1} parent=11 // pred_fallthru
          _
        // Predicated region
        $region21: #{tpu_custom_call.1} parent=11 // pred_check
          %p188 = pneg %p120
        $region22: #{tpu_custom_call.1} parent=11 // pred_check_branch
          %190 = sbr.rel (%p188) target = $region24
        $region23: #{tpu_custom_call.1} parent=11 // pred_region
          _
        $region24: #{tpu_custom_call.1} parent=11 // pred_fallthru
          _
        // Predicated region
        $region25: #{tpu_custom_call.1} parent=11 // pred_check
          %p191 = pneg %p141
        $region26: #{tpu_custom_call.1} parent=11 // pred_check_branch
          %193 = sbr.rel (%p191) target = $region28
        $region27: #{tpu_custom_call.1} parent=11 // pred_region
          _
        $region28: #{tpu_custom_call.1} parent=11 // pred_fallthru
          _
      $region12: #{tpu_custom_call.1} parent=5 // pred_fallthru
        _
      %p194 = scmp.lt.s32.totalorder %s17, 4
      // Predicated region
      $region29: #{tpu_custom_call.1} parent=5 // pred_check
        %p195 = pneg %p194
      $region30: #{tpu_custom_call.1} parent=5 // pred_check_branch
        %197 = sbr.rel (%p195) target = $region32
      $region31: #{tpu_custom_call.1} parent=5 // pred_region
        // Predicated region
        $region33: #{tpu_custom_call.1} parent=31 // pred_check
          %p198 = pneg %p51
        $region34: #{tpu_custom_call.1} parent=31 // pred_check_branch
          %200 = sbr.rel (%p198) target = $region36
        $region35: #{tpu_custom_call.1} parent=31 // pred_region
          %s201 = sand.u32 %s41, 1
          %s202 = scalar_lea.sflag [#allocation4], %s201
          %s203 = sand.u32 %s41, 1
          %s204 = smul.addr %s203, 64
          %s205 = scalar_lea.vmem [#allocation3], %s204
          %207 = vsyncadd %s202, 0
          %s208 = smul.addr %s24, 16
          %s209 = sadd.s32 %s25, %s208
          %s210 = smul.addr %s209, 8
          %s211 = scalar_lea.hbm %s0, %s210
          %s212 = sshll.u32 %s211, 4
          %s213 = int_to_ptr.hbm [resolvable:$true] %s212
          %s214 = sshll.u32 %s205, 4
          %s215 = int_to_ptr.vmem [resolvable:$true] %s214
          %220 = dma.hbm_to_vmem [thread:$0]  %s213, 1024, %s215, %s202, 256, 128, 8
        $region36: #{tpu_custom_call.1} parent=31 // pred_fallthru
          _
      $region32: #{tpu_custom_call.1} parent=5 // pred_fallthru
        _
      %p221 = scmp.le.s32.totalorder 1, %s17
      %p222 = scmp.lt.s32.totalorder %s17, 5
      %p223 = pnand %p221, %p222
      %p224 = pneg %p223
      // Predicated region
      $region37: #{tpu_custom_call.1} parent=5 // pred_check
        _
      $region38: #{tpu_custom_call.1} parent=5 // pred_check_branch
        %226 = sbr.rel (%p223) target = $region40
      $region39: #{tpu_custom_call.1} parent=5 // pred_region
        %s227 = ssub.s32 %s17, 1
        %s228 = sand.u32 %s44, 1
        %s229 = scalar_lea.sflag [#allocation4], %s228
        %s230 = sand.u32 %s44, 1
        %s231 = smul.addr %s230, 64
        %s232 = scalar_lea.vmem [#allocation3], %s231
        // Predicated region
        $region41: #{tpu_custom_call.1} parent=39 // pred_check
          %p233 = pneg %p57
        $region42: #{tpu_custom_call.1} parent=39 // pred_check_branch
          %235 = sbr.rel (%p233) target = $region44
        $region43: #{tpu_custom_call.1} parent=39 // pred_region
          %237 = dma.done %s229, 1024
        $region44: #{tpu_custom_call.1} parent=39 // pred_fallthru
          _
        %s238 = sand.u32 %s44, 1
        %s239 = scalar_lea.sflag [#allocation4], %s238
        %s240 = sand.u32 %s44, 1
        %s241 = smul.addr %s240, 64
        %s242 = scalar_lea.vmem [#allocation3], %s241
        %p243 = pneg %p57
        %p244 = pneg %p54
        %p245 = pneg %p78
        %p246 = pneg %p75
        %p247 = pneg %p99
        %p248 = pneg %p96
        %p249 = pneg %p120
        %p250 = pneg %p117
        %p251 = pneg %p141
        %p252 = pneg %p138
        %p253 = pneg %p167
        %p254 = pneg %p164
        %s255 = sand.u32 %s154, 1
        %s256 = scalar_lea.sflag [#allocation5], %s255
        %s257 = sand.u32 %s154, 1
        %s258 = scalar_lea.vmem [#allocation6], %s257
        %p259 = scmp.eq.s32.totalorder %s27, 0
        // Predicated region
        $region45: #{tpu_custom_call.1} parent=39 // pred_check
          %p260 = pneg %p259
        $region46: #{tpu_custom_call.1} parent=39 // pred_check_branch
          %262 = sbr.rel (%p260) target = $region48
        $region47: #{tpu_custom_call.1} parent=39 // pred_region
          %263 = vst [vmem:[#allocation2] sm:$0xff] 0.0
          %264 = vst [vmem:[#allocation2 + $0x8] sm:$0xff] 0.0
          %265 = vst [vmem:[#allocation2 + $0x10] sm:$0xff] 0.0
          %266 = vst [vmem:[#allocation2 + $0x18] sm:$0xff] 0.0
          %267 = vst [vmem:[#allocation2 + $0x20] sm:$0xff] 0.0
          %268 = vst [vmem:[#allocation2 + $0x28] sm:$0xff] 0.0
          %269 = vst [vmem:[#allocation2 + $0x30] sm:$0xff] 0.0
          %270 = vst [vmem:[#allocation2 + $0x38] sm:$0xff] 0.0
        $region48: #{tpu_custom_call.1} parent=39 // pred_fallthru
          _
        %v271 = vld [vmem:[%s232] sm:$0xff]
        %v272 = vld [vmem:[%s232 + $0x8] sm:$0xff]
        %v273 = vld [vmem:[%s232 + $0x10] sm:$0xff]
        %v274 = vld [vmem:[%s232 + $0x18] sm:$0xff]
        %v275 = vld [vmem:[%s232 + $0x20] sm:$0xff]
        %v276 = vld [vmem:[%s232 + $0x28] sm:$0xff]
        %v277 = vld [vmem:[%s232 + $0x30] sm:$0xff]
        %v278 = vld [vmem:[%s232 + $0x38] sm:$0xff]
        %v279 = vld [vmem:[#allocation2] sm:$0xff]
        %v280 = vld [vmem:[#allocation2 + $0x8] sm:$0xff]
        %v281 = vld [vmem:[#allocation2 + $0x10] sm:$0xff]
        %v282 = vld [vmem:[#allocation2 + $0x18] sm:$0xff]
        %v283 = vld [vmem:[#allocation2 + $0x20] sm:$0xff]
        %v284 = vld [vmem:[#allocation2 + $0x28] sm:$0xff]
        %v285 = vld [vmem:[#allocation2 + $0x30] sm:$0xff]
        %v286 = vld [vmem:[#allocation2 + $0x38] sm:$0xff]
        %v287 = vadd.f32 %v279, %v271
        %v288 = vadd.f32 %v280, %v272
        %v289 = vadd.f32 %v281, %v273
        %v290 = vadd.f32 %v282, %v274
        %v291 = vadd.f32 %v283, %v275
        %v292 = vadd.f32 %v284, %v276
        %v293 = vadd.f32 %v285, %v277
        %v294 = vadd.f32 %v286, %v278
        %295 = vst [vmem:[#allocation2] sm:$0xff] %v287
        %296 = vst [vmem:[#allocation2 + $0x8] sm:$0xff] %v288
        %297 = vst [vmem:[#allocation2 + $0x10] sm:$0xff] %v289
        %298 = vst [vmem:[#allocation2 + $0x18] sm:$0xff] %v290
        %299 = vst [vmem:[#allocation2 + $0x20] sm:$0xff] %v291
        %300 = vst [vmem:[#allocation2 + $0x28] sm:$0xff] %v292
        %301 = vst [vmem:[#allocation2 + $0x30] sm:$0xff] %v293
        %302 = vst [vmem:[#allocation2 + $0x38] sm:$0xff] %v294
        %p303 = scmp.eq.s32.totalorder %s27, 1
        // Predicated region
        $region49: #{tpu_custom_call.1} parent=39 // pred_check
          %p304 = pneg %p303
        $region50: #{tpu_custom_call.1} parent=39 // pred_check_branch
          %306 = sbr.rel (%p304) target = $region52
        $region51: #{tpu_custom_call.1} parent=39 // pred_region
          %v307 = vld [vmem:[#allocation2] sm:$0xff]
          %v308 = vld [vmem:[#allocation2 + $0x8] sm:$0xff]
          %v309 = vld [vmem:[#allocation2 + $0x10] sm:$0xff]
          %v310 = vld [vmem:[#allocation2 + $0x18] sm:$0xff]
          %v311 = vld [vmem:[#allocation2 + $0x20] sm:$0xff]
          %v312 = vld [vmem:[#allocation2 + $0x28] sm:$0xff]
          %v313 = vld [vmem:[#allocation2 + $0x30] sm:$0xff]
          %v314 = vld [vmem:[#allocation2 + $0x38] sm:$0xff]
          %315 = vadd.xlane.f32.xlu0 %v307
          %v316 = vpop.xlane.xlu0 %315
          %317 = vadd.xlane.f32.xlu0 %v308
          %v318 = vpop.xlane.xlu0 %317
          %319 = vadd.xlane.f32.xlu0 %v309
          %v320 = vpop.xlane.xlu0 %319
          %321 = vadd.xlane.f32.xlu0 %v310
          %v322 = vpop.xlane.xlu0 %321
          %323 = vadd.xlane.f32.xlu0 %v311
          %v324 = vpop.xlane.xlu0 %323
          %325 = vadd.xlane.f32.xlu0 %v312
          %v326 = vpop.xlane.xlu0 %325
          %327 = vadd.xlane.f32.xlu0 %v313
          %v328 = vpop.xlane.xlu0 %327
          %329 = vadd.xlane.f32.xlu0 %v314
          %v330 = vpop.xlane.xlu0 %329
          %v331 = vmul.f32 %v316, 0.00390625
          %v332 = vmul.f32 %v318, 0.00390625
          %v333 = vmul.f32 %v320, 0.00390625
          %v334 = vmul.f32 %v322, 0.00390625
          %v335 = vmul.f32 %v324, 0.00390625
          %v336 = vmul.f32 %v326, 0.00390625
          %v337 = vmul.f32 %v328, 0.00390625
          %v338 = vmul.f32 %v330, 0.00390625
          %v339 = vld [vmem:[%s1] sm:$0xff]
          %v340 = vld [vmem:[%s1 + $0x8] sm:$0xff]
          %v341 = vld [vmem:[%s1 + $0x10] sm:$0xff]
          %v342 = vld [vmem:[%s1 + $0x18] sm:$0xff]
          %v343 = vld [vmem:[%s1 + $0x20] sm:$0xff]
          %v344 = vld [vmem:[%s1 + $0x28] sm:$0xff]
          %v345 = vld [vmem:[%s1 + $0x30] sm:$0xff]
          %v346 = vld [vmem:[%s1 + $0x38] sm:$0xff]
          %v347 = vld [vmem:[%s2] sm:$0x1]
          %v356 = vlaneseq
          %v357 = vand.u32 %v356, 127
          %v358 = vperm.slane %v331, %v357
          %v359 = vadd.s32 %v357, 4294967288
          %v360 = vperm.slane %v332, %v359
          %vm361 = vcmask 130112
          %v362 = vsel %vm361, %v360, %v358
          %v363 = vadd.s32 %v357, 4294967280
          %v364 = vperm.slane %v333, %v363
          %vm365 = vcmask 195712
          %v366 = vsel %vm365, %v364, %v362
          %v367 = vadd.s32 %v357, 4294967272
          %v368 = vperm.slane %v334, %v367
          %vm369 = vcmask 261312
          %v370 = vsel %vm369, %v368, %v366
          %v371 = vadd.s32 %v357, 4294967264
          %v372 = vperm.slane %v335, %v371
          %vm373 = vcmask 326912
          %v374 = vsel %vm373, %v372, %v370
          %v375 = vadd.s32 %v357, 4294967256
          %v376 = vperm.slane %v336, %v375
          %vm377 = vcmask 392512
          %v378 = vsel %vm377, %v376, %v374
          %v379 = vadd.s32 %v357, 4294967248
          %v380 = vperm.slane %v337, %v379
          %vm381 = vcmask 458112
          %v382 = vsel %vm381, %v380, %v378
          %v383 = vadd.s32 %v357, 4294967240
          %v384 = vperm.slane %v338, %v383
          %vm385 = vcmask 523712
          %v386 = vsel %vm385, %v384, %v382
          %vm387 = vcmask 523264
          %v388 = vsel %vm387, %v386, 0
          %390 = vmatpush.msra.mxu0 0.0
          %391 = vmatpush.msra.mxu0 0.0
          %392 = vmatpush.msra.mxu0 0.0
          %393 = vmatpush.msra.mxu0 0.0
          %394 = vmatpush.msra.mxu0 0.0
          %395 = vmatpush.msra.mxu0 0.0
          %396 = vmatpush.msra.mxu0 0.0
          %397 = vmatpush.msra.mxu0 0.0
          %398 = vmatpush.msra.mxu0 %v346
          %399 = vmatpush.msra.mxu0 %v345
          %400 = vmatpush.msra.mxu0 %v344
          %401 = vmatpush.msra.mxu0 %v343
          %402 = vmatpush.msra.mxu0 %v342
          %403 = vmatpush.msra.mxu0 %v341
          %404 = vmatpush.msra.mxu0 %v340
          %405 = vmatpush.msra.mxu0 %v339
          %406 = vmatmul.f32.gmra.mxu0 %v388
          %v407 = vpop.f32.mrf.mxu0
          %v408 = vadd.f32 %v347, %v407
          %409 = vdwg.mxu0
          %v410 = vmax.f32 %v408, 0.0
          %v411 = vld [vmem:[%s3] sm:$0xf]
          %v412 = vld [vmem:[%s4] sm:$0x1]
          %vm413 = vcmask 31744
          %v415 = vsel %vm413, %v410, 0
          %vm417 = vcmask 1043456
          %v419 = vsel %vm417, %v411, 0
          %421 = vmatpush.msra.mxu0 0.0
          %422 = vmatpush.msra.mxu0 0.0
          %423 = vmatpush.msra.mxu0 0.0
          %424 = vmatpush.msra.mxu0 0.0
          %425 = vmatpush.msra.mxu0 0.0
          %426 = vmatpush.msra.mxu0 0.0
          %427 = vmatpush.msra.mxu0 0.0
          %428 = vmatpush.msra.mxu0 0.0
          %429 = vmatpush.msra.mxu0 0.0
          %430 = vmatpush.msra.mxu0 0.0
          %431 = vmatpush.msra.mxu0 0.0
          %432 = vmatpush.msra.mxu0 0.0
          %433 = vmatpush.msra.mxu0 0.0
          %434 = vmatpush.msra.mxu0 0.0
          %435 = vmatpush.msra.mxu0 0.0
          %436 = vmatpush.msra.mxu0 %v419
          %437 = vmatmul.f32.gmra.mxu0 %v415
          %v438 = vpop.f32.mrf.mxu0
          %v439 = vadd.f32 %v412, %v438
          %440 = vdwg.mxu0
          %v441 = vxor.u32 %v439, 2147483648
          %v442 = vmul.f32 %v441, 1.442695
          %v443 = vpow.pop %v442
          %v444 = vadd.f32 %v443, 1.0
          %v445 = vrcp.pop %v444
          %v446 = vmul.f32 %v444, %v445
          %v447 = vsub.f32 1.0, %v446
          %v448 = vmul.f32 %v445, %v447
          %v449 = vadd.f32 %v445, %v448
          %vm450 = vweird.f32 %v444
          %vm451 = vweird.f32 %v445
          %vm452 = vmor %vm450, %vm451
          %v453 = vsel %vm452, %v445, %v449
          %v454 = vand.u32 2147483647, %v444
          %vm455 = vcmp.eq.f32.partialorder %v454, 8.507059e+37
          %v456 = vand.u32 %v444, 2147483648
          %v457 = vor.u32 1.1754944e-38, %v456
          %v458 = vsel %vm455, %v457, %v453
          %v459 = vmul.f32 1.0, %v458
          %vm460 = vcmask 516096
          %461 = vst.msk [vmem:[%s258] sm:$0x1] %vm460, %v459
        $region52: #{tpu_custom_call.1} parent=39 // pred_fallthru
          _
        %s462 = sand.u32 %s154, 1
        %s463 = scalar_lea.sflag [#allocation5], %s462
        %s464 = sand.u32 %s154, 1
        %s465 = scalar_lea.vmem [#allocation6], %s464
        // Predicated region
        $region53: #{tpu_custom_call.1} parent=39 // pred_check
          %p466 = pneg %p164
        $region54: #{tpu_custom_call.1} parent=39 // pred_check_branch
          %468 = sbr.rel (%p466) target = $region56
        $region55: #{tpu_custom_call.1} parent=39 // pred_region
          %470 = vsyncadd %s463, 0
          %s471 = scalar_lea.hbm %s5, %s26
          %s473 = sshll.u32 %s465, 4
          %s474 = int_to_ptr.vmem [resolvable:$true] %s473
          %s475 = sshll.u32 %s471, 4
          %s476 = int_to_ptr.hbm [resolvable:$true] %s475
          %478 = dma.vmem_to_hbm [thread:$0]  %s474, 16, %s476, %s463
        $region56: #{tpu_custom_call.1} parent=39 // pred_fallthru
          _
      $region40: #{tpu_custom_call.1} parent=5 // pred_fallthru
        _
      %p479 = scmp.le.s32.totalorder 2, %s17
      // Predicated region
      $region57: #{tpu_custom_call.1} parent=5 // pred_check
        %p480 = pneg %p479
      $region58: #{tpu_custom_call.1} parent=5 // pred_check_branch
        %482 = sbr.rel (%p480) target = $region60
      $region59: #{tpu_custom_call.1} parent=5 // pred_region
        %s483 = ssub.s32 %s17, 2
        // Predicated region
        $region61: #{tpu_custom_call.1} parent=59 // pred_check
          %p484 = pneg %p170
        $region62: #{tpu_custom_call.1} parent=59 // pred_check_branch
          %486 = sbr.rel (%p484) target = $region64
        $region63: #{tpu_custom_call.1} parent=59 // pred_region
          %s487 = sand.u32 %s155, 1
          %s488 = scalar_lea.sflag [#allocation5], %s487
          %s489 = sand.u32 %s155, 1
          %s490 = scalar_lea.vmem [#allocation6], %s489
          %492 = dma.done %s488, 16
        $region64: #{tpu_custom_call.1} parent=59 // pred_fallthru
          _
      $region60: #{tpu_custom_call.1} parent=5 // pred_fallthru
        _
    $region6: #{tpu_custom_call.1} parent=1 // loop_footer
      %s21 = sadd.s32 1, %s17
    $region7: #{tpu_custom_call.1} parent=1 // loop_footer_branch
      %16 = sbr.rel target = $region3
    $region8: #{tpu_custom_call.1} parent=1 // loop_exit
      _
    %493 = vsyncpa [#allocation4], 1
    %s494 = scalar_lea.sflag [#allocation4], 1
    %495 = vsyncpa %s494, 1
    %496 = vsyncpa [#allocation5], 1
    %s497 = scalar_lea.sflag [#allocation5], 1
    %498 = vsyncpa %s497, 1

</llo_original>
